<compile_context>
chip_gen: v7x
topology: tpu7x:2x2x1
jax: 0.10.0
libtpu: 0.0.40
codegen_flags: <defaults>
</compile_context>

<pallas_src>
import functools

import jax
import jax.numpy as jnp
from jax import lax
from jax.experimental import pallas as pl
from jax.experimental.pallas import tpu as pltpu


def _round_up(x, m):
    return ((x + m - 1) // m) * m


def _cdiv(a, b):
    return -(-a // b)


# ----------------------------------------------------------------------------
# Kernels
# ----------------------------------------------------------------------------
def _conv_bn_relu_kernel(patches_ref, w_ref, bias_ref, out_ref):
    """Single-K-step fast path: no accumulator scratch, direct store."""
    acc = jnp.dot(patches_ref[...], w_ref[...],
                  preferred_element_type=jnp.float32)
    out_ref[...] = jnp.maximum(acc + bias_ref[...], 0.0).astype(out_ref.dtype)


def _conv_bn_relu_kernel_ksplit(tk, w_resident,
                                patches_ref, w_ref, bias_ref, out_ref, acc_ref):
    """K-tiled path with f32 VMEM accumulator (K is the innermost grid axis)."""
    kk = pl.program_id(2)

    @pl.when(kk == 0)
    def _init():
        acc_ref[...] = jnp.zeros_like(acc_ref)

    if w_resident:
        # Weight block covers the whole K; slice the current K chunk in VMEM
        # (no HBM re-fetch per K step).
        off = pl.multiple_of(kk * tk, tk)
        w = w_ref[pl.ds(off, tk), :]
    else:
        w = w_ref[...]
    acc_ref[...] += jnp.dot(patches_ref[...], w,
                            preferred_element_type=jnp.float32)

    @pl.when(kk == pl.num_programs(2) - 1)
    def _finalize():
        y = acc_ref[...] + bias_ref[...]
        out_ref[...] = jnp.maximum(y, 0.0).astype(out_ref.dtype)


# ----------------------------------------------------------------------------
# Host-side helpers
# ----------------------------------------------------------------------------
def _im2col_nchw(x, kernel_size, stride, padding, dilation, dtype=jnp.bfloat16):
    """x: (N, Cin, H, W) -> patches (N*OH*OW, Cin*KH*KW) in `dtype`, plus OH, OW."""
    # TODO(synk): fuse the KH*KW patch extraction into the kernel (manual DMA
    # from an NHWC HBM ref) so the im2col matrix is never materialized in HBM.
    kh = kw = kernel_size
    n, cin, h, w = x.shape
    xp = jnp.pad(x.astype(dtype),
                 ((0, 0), (0, 0), (padding, padding), (padding, padding)))
    hp = h + 2 * padding
    wp = w + 2 * padding
    oh = (hp - dilation * (kh - 1) - 1) // stride + 1
    ow = (wp - dilation * (kw - 1) - 1) // stride + 1

    taps = []
    for ih in range(kh):
        for iw in range(kw):
            h0 = ih * dilation
            w0 = iw * dilation
            sl = xp[:, :, h0:h0 + stride * (oh - 1) + 1:stride,
                         w0:w0 + stride * (ow - 1) + 1:stride]  # (N, Cin, OH, OW)
            taps.append(sl)
    stk = jnp.stack(taps, axis=0)                  # (KH*KW, N, Cin, OH, OW)
    stk = jnp.transpose(stk, (1, 3, 4, 2, 0))      # (N, OH, OW, Cin, KH*KW)
    # flatten rows ordered (Cin, KH, KW) to match the PyTorch OIHW weight layout
    patches = stk.reshape(n * oh * ow, cin * kh * kw)
    return patches, oh, ow


def _tpu_caps():
    """Per-generation (VMEM capacity bytes, chip generation) with safe fallbacks."""
    cap = 128 * 1024 * 1024
    gen = 6
    try:
        info = pltpu.get_tpu_info()
        cap = int(getattr(info, "vmem_capacity_bytes", cap) or cap)
        s = ""
        for attr in ("chip_version", "version", "chip_name", "name"):
            v = getattr(info, attr, None)
            if v is not None:
                s += str(v) + " "
        for g in ("7", "6", "5"):
            if g in s:
                gen = int(g)
                break
    except Exception:
        pass
    return cap, gen


def _pick_tm(m8, tk, tn, w_block_bytes, multi_k, budget_bytes):
    """Largest padding-friendly tm whose double-buffered tiles fit the budget."""
    candidates = [t for t in (2048, 1024, 512, 256, 128, 64, 32, 16, 8) if t <= m8]
    if not candidates:
        candidates = [8]
    fixed = 2 * w_block_bytes + 2 * 2 * tn * 4      # weight + bias (2 buffers each)

    def need(tm):
        return (fixed
                + 2 * tm * tk * 2                    # patches, bf16, double-buffered
                + 2 * tm * tn * 4                    # out, f32, double-buffered
                + (tm * tn * 4 if multi_k else 0))   # f32 accumulator

    fitting = [t for t in candidates if need(t) <= budget_bytes]
    if not fitting:
        return candidates[-1]
    # Prefer the largest tile that pads M by at most ~12.5%.
    for tm in fitting:
        if _round_up(m8, tm) * 8 <= m8 * 9:
            return tm
    # Otherwise minimize padded rows (tie-break on larger tile).
    return min(fitting, key=lambda t: (_round_up(m8, t), -t))


# ----------------------------------------------------------------------------
# Public wrapper
# ----------------------------------------------------------------------------
@functools.partial(jax.jit, static_argnames=("kernel_size", "stride", "padding", "dilation"))
def basic_conv2d(x, weight, gamma, beta, running_mean, running_var,
                 kernel_size, stride=1, padding=0, dilation=1, eps=1e-5):
    """x: (N, Cin, H, W) f32; weight: (Cout, Cin, KH, KW) f32. Returns NCHW f32."""
    n, cin, _, _ = x.shape
    cout = weight.shape[0]

    patches, oh, ow = _im2col_nchw(x, kernel_size, stride, padding, dilation,
                                   dtype=jnp.bfloat16)
    m, k = patches.shape

    # Fold BN (eval mode) into the weight matrix + a per-channel bias (f32 fold,
    # then cast the weight to bf16 for the MXU).
    scale = gamma / jnp.sqrt(running_var + eps)                 # (Cout,)
    bias = beta - running_mean * scale                          # (Cout,)
    w_mat = (weight.reshape(cout, k).astype(jnp.float32).T
             * scale[None, :].astype(jnp.float32))              # (K, Cout)
    w_mat = w_mat.astype(jnp.bfloat16)
    bias = bias.reshape(1, cout).astype(jnp.float32)

    # --- per-generation tiling budget ---------------------------------------
    vmem_cap, gen = _tpu_caps()
    budget = min(vmem_cap // 2, 48 * 1024 * 1024)               # tile budget
    vmem_limit = int(min(vmem_cap, budget + 16 * 1024 * 1024))  # scoped VMEM limit

    # Lane-dense output channels.
    cout_pad = _round_up(cout, 128)
    tn = 256 if (gen != 5 and cout_pad % 256 == 0) else 128

    # K padded to a lane-dense multiple of 128; tile only when genuinely large.
    k128 = _round_up(k, 128)
    if k128 <= 4096:
        multi_k = False
        tk = k_pad = k128
        w_resident = True
    else:
        multi_k = True
        nk = _cdiv(k128, 2048)
        tk = _round_up(_cdiv(k128, nk), 128)
        k_pad = nk * tk
        # Keep the full-K weight resident in VMEM unless it is itself huge.
        w_resident = (2 * k_pad * tn * 2) <= budget // 3

    w_block_rows = k_pad if w_resident else tk
    w_block_bytes = w_block_rows * tn * 2

    m8 = _round_up(m, 8)
    tm = _pick_tm(m8, tk, tn, w_block_bytes, multi_k, budget)
    m_pad = _round_up(m, tm)

    if m_pad != m or k_pad != k:
        patches = jnp.pad(patches, ((0, m_pad - m), (0, k_pad - k)))
    if k_pad != k or cout_pad != cout:
        w_mat = jnp.pad(w_mat, ((0, k_pad - k), (0, cout_pad - cout)))
    if cout_pad != cout:
        bias = jnp.pad(bias, ((0, 0), (0, cout_pad - cout)))

    # --- pallas_call ----------------------------------------------------------
    if not multi_k:
        grid = (m_pad // tm, cout_pad // tn)
        kernel = _conv_bn_relu_kernel
        in_specs = [
            pl.BlockSpec((tm, k_pad), lambda i, j: (i, 0)),
            pl.BlockSpec((k_pad, tn), lambda i, j: (0, j)),
            pl.BlockSpec((1, tn), lambda i, j: (0, j)),
        ]
        out_specs = pl.BlockSpec((tm, tn), lambda i, j: (i, j))
        scratch = []
        dims = ("parallel", "parallel")
    else:
        grid = (m_pad // tm, cout_pad // tn, k_pad // tk)
        kernel = functools.partial(_conv_bn_relu_kernel_ksplit, tk, w_resident)
        if w_resident:
            w_spec = pl.BlockSpec((k_pad, tn), lambda i, j, kk: (0, j))
        else:
            w_spec = pl.BlockSpec((tk, tn), lambda i, j, kk: (kk, j))
        in_specs = [
            pl.BlockSpec((tm, tk), lambda i, j, kk: (i, kk)),
            w_spec,
            pl.BlockSpec((1, tn), lambda i, j, kk: (0, j)),
        ]
        out_specs = pl.BlockSpec((tm, tn), lambda i, j, kk: (i, j))
        scratch = [pltpu.VMEM((tm, tn), jnp.float32)]
        dims = ("parallel", "parallel", "arbitrary")

    # TODO(synk): on v7x, shard the M axis across the two TensorCores
    # (CORE_PARALLEL / pl.core_map) instead of plain "parallel".
    out = pl.pallas_call(
        kernel,
        out_shape=jax.ShapeDtypeStruct((m_pad, cout_pad), jnp.float32),
        grid_spec=pltpu.PrefetchScalarGridSpec(
            num_scalar_prefetch=0,
            grid=grid,
            in_specs=in_specs,
            out_specs=out_specs,
            scratch_shapes=scratch,
        ),
        compiler_params=pltpu.CompilerParams(
            dimension_semantics=dims,
            vmem_limit_bytes=vmem_limit),
    )(patches, w_mat, bias)

    out = out[:m, :cout]  # drop row / channel padding
    # (N*OH*OW, Cout) -> (N, Cout, OH, OW).
    # TODO(synk): emit NHWC (or the flat (M, Cout) slab) directly when the
    # consumer accepts it, to save a full HBM transpose pass.
    out = out.reshape(n, oh, ow, cout).transpose(0, 3, 1, 2)
    return out


if __name__ == "__main__":
    # Module config (deterministic synthetic params, no checkpoint load).
    in_planes, out_planes = 4, 8
    kernel_size, stride, padding, dilation = 3, 1, 1, 1

    key = jax.random.PRNGKey(0)
    kx, kw, kg, kb, km, kv = jax.random.split(key, 6)

    x = jax.random.normal(kx, (2, in_planes, 16, 16), dtype=jnp.float32)
    weight = jax.random.normal(
        kw, (out_planes, in_planes, kernel_size, kernel_size), dtype=jnp.float32) * 0.1
    gamma = jax.random.normal(kg, (out_planes,), dtype=jnp.float32) * 0.1 + 1.0
    beta = jax.random.normal(kb, (out_planes,), dtype=jnp.float32) * 0.1
    running_mean = jax.random.normal(km, (out_planes,), dtype=jnp.float32) * 0.1
    running_var = jax.random.uniform(kv, (out_planes,), dtype=jnp.float32,
                                     minval=0.5, maxval=1.5)

    out = basic_conv2d(x, weight, gamma, beta, running_mean, running_var,
                       kernel_size=kernel_size, stride=stride,
                       padding=padding, dilation=dilation)
    out = jax.block_until_ready(out)

    # Reference check against XLA conv + BN(eval) + ReLU (f32 reference; the
    # kernel uses bf16 MXU operands with f32 accumulation, so use a relative
    # tolerance instead of the old 1e-4 absolute check).
    ref_conv = lax.conv_general_dilated(
        x, weight, window_strides=(stride, stride),
        padding=((padding, padding), (padding, padding)),
        rhs_dilation=(dilation, dilation),
        dimension_numbers=("NCHW", "OIHW", "NCHW"))
    inv_std = 1.0 / jnp.sqrt(running_var + 1e-5)
    ref = (ref_conv - running_mean[None, :, None, None]) * \
          (gamma * inv_std)[None, :, None, None] + beta[None, :, None, None]
    ref = jnp.maximum(ref, 0.0)

    assert out.shape == ref.shape, (out.shape, ref.shape)
    max_err = float(jnp.max(jnp.abs(out - ref)))
    ref_scale = float(jnp.max(jnp.abs(ref))) + 1e-6
    assert max_err / ref_scale < 2e-2, (max_err, ref_scale)
    print("KERNEL_OK")
</pallas_src>

<mosaic_0001>
module attributes {stable_mosaic.version = 11 : i64} {
  func.func @_conv_bn_relu_kernel(%arg0: i32, %arg1: i32, %arg2: memref<512x128xbf16, #tpu.memory_space<vmem>>, %arg3: memref<128x128xbf16, #tpu.memory_space<vmem>>, %arg4: memref<1x128xf32, #tpu.memory_space<vmem>>, %arg5: memref<512x128xf32, #tpu.memory_space<vmem>>) attributes {dimension_semantics = [#tpu.dimension_semantics<parallel>, #tpu.dimension_semantics<parallel>], iteration_bounds = array<i64: 1, 1>, scalar_prefetch = 0 : i64, scratch_operands = 0 : i64, tpu.core_type = #tpu.core_type<tc>, window_params = [{transform_indices = @transform_0, window_bounds = array<i64: 512, 128>}, {transform_indices = @transform_1, window_bounds = array<i64: 128, 128>}, {transform_indices = @transform_2, window_bounds = array<i64: 1, 128>}, {transform_indices = @transform_3, window_bounds = array<i64: 512, 128>}]} {
    %c0 = arith.constant 0 : index
    %c0_0 = arith.constant 0 : index
    %0 = vector.load %arg2[%c0, %c0_0] : memref<512x128xbf16, #tpu.memory_space<vmem>>, vector<512x128xbf16>
    %c0_1 = arith.constant 0 : index
    %c0_2 = arith.constant 0 : index
    %1 = vector.load %arg3[%c0_1, %c0_2] : memref<128x128xbf16, #tpu.memory_space<vmem>>, vector<128x128xbf16>
    %cst = arith.constant dense<0.000000e+00> : vector<512x128xf32>
    %2 = tpu.matmul %0, %1, %cst {dimension_numbers = #tpu.dot_dimension_numbers<[1], [0], [0], [1], [0, 0, 1, 1], [], []>} : vector<512x128xbf16>, vector<128x128xbf16>, vector<512x128xf32> -> vector<512x128xf32>
    %c0_3 = arith.constant 0 : index
    %c0_4 = arith.constant 0 : index
    %3 = vector.load %arg4[%c0_3, %c0_4] : memref<1x128xf32, #tpu.memory_space<vmem>>, vector<1x128xf32>
    %4 = vector.broadcast %3 : vector<1x128xf32> to vector<512x128xf32>
    %5 = arith.addf %2, %4 : vector<512x128xf32>
    %cst_5 = arith.constant 0.000000e+00 : f32
    %6 = vector.broadcast %cst_5 : f32 to vector<512x128xf32>
    %7 = arith.maximumf %5, %6 : vector<512x128xf32>
    %c0_6 = arith.constant 0 : index
    %c0_7 = arith.constant 0 : index
    %8 = vector.load %arg5[%c0_6, %c0_7] : memref<512x128xf32, #tpu.memory_space<vmem>>, vector<512x128xf32>
    tpu.vector_store %arg5[%c0_6, %c0_7], %7 {strides = array<i32>} : memref<512x128xf32, #tpu.memory_space<vmem>>, vector<512x128xf32>,
    return
  }
  func.func @transform_0(%arg0: i32, %arg1: i32) -> (i32, i32) {
    %c0_i32 = arith.constant 0 : i32
    %c0_i32_0 = arith.constant 0 : i32
    return %arg0, %c0_i32 : i32, i32
  }
  func.func @transform_1(%arg0: i32, %arg1: i32) -> (i32, i32) {
    %c0_i32 = arith.constant 0 : i32
    %c0_i32_0 = arith.constant 0 : i32
    return %c0_i32, %arg1 : i32, i32
  }
  func.func @transform_2(%arg0: i32, %arg1: i32) -> (i32, i32) {
    %c0_i32 = arith.constant 0 : i32
    %c0_i32_0 = arith.constant 0 : i32
    return %c0_i32, %arg1 : i32, i32
  }
  func.func @transform_3(%arg0: i32, %arg1: i32) -> (i32, i32) {
    %c0_i32 = arith.constant 0 : i32
    return %arg0, %arg1 : i32, i32
  }
}

</mosaic_0001>

<llo_original>
// kernel: basic_conv2d.1
$region0: #{basic_conv2d.1}
  #allocation0 [shape = 'u32[]', space=smem, size = 0x4, offset = 0x4, fixed_abs, tag = 'smem constant byte address 0x4 - core index']
  #allocation1 [shape = 'u32[144,128]{1,0:T(1,128)}', space=vmem, size = 0x12000, scoped, tag = 'internal scratch']
  %s0 = inlined_call_operand.hbm [shape: bf16[512,128], index: 0, kind: input, shape index: {}]
  %s1 = inlined_call_operand.hbm [shape: bf16[128,128], index: 1, kind: input, shape index: {}]
  %s2 = inlined_call_operand.hbm [shape: f32[1,128], index: 2, kind: input, shape index: {}]
  %s3 = inlined_call_operand.hbm [shape: f32[512,128], index: 3, kind: output, shape index: {}]
  %s4 = sld [smem:[#allocation0]]
  $region34: #{basic_conv2d.1} parent=0
    _
  %s6 = ssub.s32 1, %s4
  %s7 = scalar_select 0, %s6, %s4
  $region1: #{basic_conv2d.1} parent=0
    #allocation2 [shape = 'u8[131072]{0}', space=vmem, size = 0x20000, scoped, tag = 'input window, operand 0, single buffered']
    #allocation3 [shape = 's32[1]{0}', space=sflag, size = 0x4, scoped, tag = 'scoped memory for basic_conv2d.1']
    #allocation4 [shape = 's32[1]{0}', space=sflag, size = 0x4, scoped, tag = 'scoped memory for basic_conv2d.1']
    #allocation5 [shape = 'u8[32768]{0}', space=vmem, size = 0x8000, scoped, tag = 'input window, operand 1, single buffered']
    #allocation6 [shape = 's32[1]{0}', space=sflag, size = 0x4, scoped, tag = 'scoped memory for basic_conv2d.1']
    #allocation7 [shape = 'u8[512]{0}', space=vmem, size = 0x400, scoped, tag = 'input window, operand 2, single buffered']
    #allocation8 [shape = 'u8[262144]{0}', space=vmem, size = 0x40000, scoped, tag = 'output window, operand 0, single buffered']
    %8 = vsyncpa [#allocation3], 0
    %9 = vsyncpa [#allocation6], 0
    %10 = vsyncpa [#allocation4], 0
    // Predicated region
    $region2: #{basic_conv2d.1} parent=1 // pred_check
      _
    $region3: #{basic_conv2d.1} parent=1 // pred_check_branch
      %12 = sbr.rel (0) target = $region5
    $region4: #{basic_conv2d.1} parent=1 // pred_region
      %s14 = ssub.s32 4096, 4096
      %15 = vsyncadd [#allocation3], %s14
      %s16 = sshll.u32 [#allocation2], 4
      %s17 = int_to_ptr.vmem [resolvable:$true] %s16
      %22 = dma.hbm_to_vmem [thread:$0]  %s0, 4096, %s17, [#allocation3], 64, 64, 4
    $region5: #{basic_conv2d.1} parent=1 // pred_fallthru
      _
    // Predicated region
    $region6: #{basic_conv2d.1} parent=1 // pred_check
      _
    $region7: #{basic_conv2d.1} parent=1 // pred_check_branch
      %24 = sbr.rel (0) target = $region9
    $region8: #{basic_conv2d.1} parent=1 // pred_region
      %s26 = ssub.s32 1024, 1024
      %27 = vsyncadd [#allocation6], %s26
      %s28 = sshll.u32 [#allocation5], 4
      %s29 = int_to_ptr.vmem [resolvable:$true] %s28
      %34 = dma.hbm_to_vmem [thread:$0]  %s1, 1024, %s29, [#allocation6], 64, 64, 4
    $region9: #{basic_conv2d.1} parent=1 // pred_fallthru
      _
    // Predicated region
    $region10: #{basic_conv2d.1} parent=1 // pred_check
      _
    $region11: #{basic_conv2d.1} parent=1 // pred_check_branch
      %36 = sbr.rel (0) target = $region13
    $region12: #{basic_conv2d.1} parent=1 // pred_region
      %s38 = ssub.s32 16, 16
      %39 = vsyncadd [#allocation6], %s38
      %s41 = sshll.u32 [#allocation7], 4
      %s42 = int_to_ptr.vmem [resolvable:$true] %s41
      %44 = dma.hbm_to_vmem [thread:$0]  %s2, 16, %s42, [#allocation6]
    $region13: #{basic_conv2d.1} parent=1 // pred_fallthru
      _
    // Predicated region
    $region14: #{basic_conv2d.1} parent=1 // pred_check
      _
    $region15: #{basic_conv2d.1} parent=1 // pred_check_branch
      %46 = sbr.rel (0) target = $region17
    $region16: #{basic_conv2d.1} parent=1 // pred_region
      %47 = dma.done [#allocation3], 4096
    $region17: #{basic_conv2d.1} parent=1 // pred_fallthru
      _
    // Predicated region
    $region18: #{basic_conv2d.1} parent=1 // pred_check
      _
    $region19: #{basic_conv2d.1} parent=1 // pred_check_branch
      %49 = sbr.rel (0) target = $region21
    $region20: #{basic_conv2d.1} parent=1 // pred_region
      %50 = dma.done [#allocation6], 1024
    $region21: #{basic_conv2d.1} parent=1 // pred_fallthru
      _
    // Predicated region
    $region22: #{basic_conv2d.1} parent=1 // pred_check
      _
    $region23: #{basic_conv2d.1} parent=1 // pred_check_branch
      %52 = sbr.rel (0) target = $region25
    $region24: #{basic_conv2d.1} parent=1 // pred_region
      %53 = dma.done [#allocation6], 16
    $region25: #{basic_conv2d.1} parent=1 // pred_fallthru
      _
    %v55 = vld [vmem:[#allocation2] sm:$0xf]
    %v56 = vld [vmem:[#allocation2 + $0x4] sm:$0xf]
    %v57 = vld [vmem:[#allocation2 + $0x8] sm:$0xf]
    %v58 = vld [vmem:[#allocation2 + $0xc] sm:$0xf]
    %v59 = vld [vmem:[#allocation2 + $0x10] sm:$0xf]
    %v60 = vld [vmem:[#allocation2 + $0x14] sm:$0xf]
    %v61 = vld [vmem:[#allocation2 + $0x18] sm:$0xf]
    %v62 = vld [vmem:[#allocation2 + $0x1c] sm:$0xf]
    %v63 = vld [vmem:[#allocation2 + $0x20] sm:$0xf]
    %v64 = vld [vmem:[#allocation2 + $0x24] sm:$0xf]
    %v65 = vld [vmem:[#allocation2 + $0x28] sm:$0xf]
    %v66 = vld [vmem:[#allocation2 + $0x2c] sm:$0xf]
    %v67 = vld [vmem:[#allocation2 + $0x30] sm:$0xf]
    %v68 = vld [vmem:[#allocation2 + $0x34] sm:$0xf]
    %v69 = vld [vmem:[#allocation2 + $0x38] sm:$0xf]
    %v70 = vld [vmem:[#allocation2 + $0x3c] sm:$0xf]
    %v71 = vld [vmem:[#allocation2 + $0x40] sm:$0xf]
    %v72 = vld [vmem:[#allocation2 + $0x44] sm:$0xf]
    %v73 = vld [vmem:[#allocation2 + $0x48] sm:$0xf]
    %v74 = vld [vmem:[#allocation2 + $0x4c] sm:$0xf]
    %v75 = vld [vmem:[#allocation2 + $0x50] sm:$0xf]
    %v76 = vld [vmem:[#allocation2 + $0x54] sm:$0xf]
    %v77 = vld [vmem:[#allocation2 + $0x58] sm:$0xf]
    %v78 = vld [vmem:[#allocation2 + $0x5c] sm:$0xf]
    %v79 = vld [vmem:[#allocation2 + $0x60] sm:$0xf]
    %v80 = vld [vmem:[#allocation2 + $0x64] sm:$0xf]
    %v81 = vld [vmem:[#allocation2 + $0x68] sm:$0xf]
    %v82 = vld [vmem:[#allocation2 + $0x6c] sm:$0xf]
    %v83 = vld [vmem:[#allocation2 + $0x70] sm:$0xf]
    %v84 = vld [vmem:[#allocation2 + $0x74] sm:$0xf]
    %v85 = vld [vmem:[#allocation2 + $0x78] sm:$0xf]
    %v86 = vld [vmem:[#allocation2 + $0x7c] sm:$0xf]
    %v87 = vld [vmem:[#allocation2 + $0x80] sm:$0xf]
    %v88 = vld [vmem:[#allocation2 + $0x84] sm:$0xf]
    %v89 = vld [vmem:[#allocation2 + $0x88] sm:$0xf]
    %v90 = vld [vmem:[#allocation2 + $0x8c] sm:$0xf]
    %v91 = vld [vmem:[#allocation2 + $0x90] sm:$0xf]
    %v92 = vld [vmem:[#allocation2 + $0x94] sm:$0xf]
    %v93 = vld [vmem:[#allocation2 + $0x98] sm:$0xf]
    %v94 = vld [vmem:[#allocation2 + $0x9c] sm:$0xf]
    %v95 = vld [vmem:[#allocation2 + $0xa0] sm:$0xf]
    %v96 = vld [vmem:[#allocation2 + $0xa4] sm:$0xf]
    %v97 = vld [vmem:[#allocation2 + $0xa8] sm:$0xf]
    %v98 = vld [vmem:[#allocation2 + $0xac] sm:$0xf]
    %v99 = vld [vmem:[#allocation2 + $0xb0] sm:$0xf]
    %v100 = vld [vmem:[#allocation2 + $0xb4] sm:$0xf]
    %v101 = vld [vmem:[#allocation2 + $0xb8] sm:$0xf]
    %v102 = vld [vmem:[#allocation2 + $0xbc] sm:$0xf]
    %v103 = vld [vmem:[#allocation2 + $0xc0] sm:$0xf]
    %v104 = vld [vmem:[#allocation2 + $0xc4] sm:$0xf]
    %v105 = vld [vmem:[#allocation2 + $0xc8] sm:$0xf]
    %v106 = vld [vmem:[#allocation2 + $0xcc] sm:$0xf]
    %v107 = vld [vmem:[#allocation2 + $0xd0] sm:$0xf]
    %v108 = vld [vmem:[#allocation2 + $0xd4] sm:$0xf]
    %v109 = vld [vmem:[#allocation2 + $0xd8] sm:$0xf]
    %v110 = vld [vmem:[#allocation2 + $0xdc] sm:$0xf]
    %v111 = vld [vmem:[#allocation2 + $0xe0] sm:$0xf]
    %v112 = vld [vmem:[#allocation2 + $0xe4] sm:$0xf]
    %v113 = vld [vmem:[#allocation2 + $0xe8] sm:$0xf]
    %v114 = vld [vmem:[#allocation2 + $0xec] sm:$0xf]
    %v115 = vld [vmem:[#allocation2 + $0xf0] sm:$0xf]
    %v116 = vld [vmem:[#allocation2 + $0xf4] sm:$0xf]
    %v117 = vld [vmem:[#allocation2 + $0xf8] sm:$0xf]
    %v118 = vld [vmem:[#allocation2 + $0xfc] sm:$0xf]
    %v119 = vld [vmem:[#allocation5] sm:$0xf]
    %v120 = vld [vmem:[#allocation5 + $0x4] sm:$0xf]
    %v121 = vld [vmem:[#allocation5 + $0x8] sm:$0xf]
    %v122 = vld [vmem:[#allocation5 + $0xc] sm:$0xf]
    %v123 = vld [vmem:[#allocation5 + $0x10] sm:$0xf]
    %v124 = vld [vmem:[#allocation5 + $0x14] sm:$0xf]
    %v125 = vld [vmem:[#allocation5 + $0x18] sm:$0xf]
    %v126 = vld [vmem:[#allocation5 + $0x1c] sm:$0xf]
    %v127 = vld [vmem:[#allocation5 + $0x20] sm:$0xf]
    %v128 = vld [vmem:[#allocation5 + $0x24] sm:$0xf]
    %v129 = vld [vmem:[#allocation5 + $0x28] sm:$0xf]
    %v130 = vld [vmem:[#allocation5 + $0x2c] sm:$0xf]
    %v131 = vld [vmem:[#allocation5 + $0x30] sm:$0xf]
    %v132 = vld [vmem:[#allocation5 + $0x34] sm:$0xf]
    %v133 = vld [vmem:[#allocation5 + $0x38] sm:$0xf]
    %v134 = vld [vmem:[#allocation5 + $0x3c] sm:$0xf]
    %v135 = vld [vmem:[#allocation7] sm:$0x1]
    %v137 = vlaneseq
    %v138 = vshrl.u32 %v137, 7
    %v139 = vsub.s32 0, %v138
    %v140 = vrot.slane %v135, %v139
    %v206 = vunpack.c.l.b16 %v55
    %v207 = vunpack.c.l.b16 %v56
    %v208 = vunpack.c.l.b16 %v57
    %v209 = vunpack.c.l.b16 %v58
    %v210 = vunpack.c.l.b16 %v59
    %v211 = vunpack.c.l.b16 %v60
    %v212 = vunpack.c.l.b16 %v61
    %v213 = vunpack.c.l.b16 %v62
    %v214 = vunpack.c.l.b16 %v63
    %v215 = vunpack.c.l.b16 %v64
    %v216 = vunpack.c.l.b16 %v65
    %v217 = vunpack.c.l.b16 %v66
    %v218 = vunpack.c.l.b16 %v67
    %v219 = vunpack.c.l.b16 %v68
    %v220 = vunpack.c.l.b16 %v69
    %v221 = vunpack.c.l.b16 %v70
    %v222 = vunpack.c.l.b16 %v71
    %v223 = vunpack.c.l.b16 %v72
    %v224 = vunpack.c.l.b16 %v73
    %v225 = vunpack.c.l.b16 %v74
    %v226 = vunpack.c.l.b16 %v75
    %v227 = vunpack.c.l.b16 %v76
    %v228 = vunpack.c.l.b16 %v77
    %v229 = vunpack.c.l.b16 %v78
    %v230 = vunpack.c.l.b16 %v79
    %v231 = vunpack.c.l.b16 %v80
    %v232 = vunpack.c.l.b16 %v81
    %v233 = vunpack.c.l.b16 %v82
    %v234 = vunpack.c.l.b16 %v83
    %v235 = vunpack.c.l.b16 %v84
    %v236 = vunpack.c.l.b16 %v85
    %v237 = vunpack.c.l.b16 %v86
    %v238 = vunpack.c.l.b16 %v87
    %v239 = vunpack.c.l.b16 %v88
    %v240 = vunpack.c.l.b16 %v89
    %v241 = vunpack.c.l.b16 %v90
    %v242 = vunpack.c.l.b16 %v91
    %v243 = vunpack.c.l.b16 %v92
    %v244 = vunpack.c.l.b16 %v93
    %v245 = vunpack.c.l.b16 %v94
    %v246 = vunpack.c.l.b16 %v95
    %v247 = vunpack.c.l.b16 %v96
    %v248 = vunpack.c.l.b16 %v97
    %v249 = vunpack.c.l.b16 %v98
    %v250 = vunpack.c.l.b16 %v99
    %v251 = vunpack.c.l.b16 %v100
    %v252 = vunpack.c.l.b16 %v101
    %v253 = vunpack.c.l.b16 %v102
    %v254 = vunpack.c.l.b16 %v103
    %v255 = vunpack.c.l.b16 %v104
    %v256 = vunpack.c.l.b16 %v105
    %v257 = vunpack.c.l.b16 %v106
    %v258 = vunpack.c.l.b16 %v107
    %v259 = vunpack.c.l.b16 %v108
    %v260 = vunpack.c.l.b16 %v109
    %v261 = vunpack.c.l.b16 %v110
    %v262 = vunpack.c.l.b16 %v111
    %v263 = vunpack.c.l.b16 %v112
    %v264 = vunpack.c.l.b16 %v113
    %v265 = vunpack.c.l.b16 %v114
    %v266 = vunpack.c.l.b16 %v115
    %v267 = vunpack.c.l.b16 %v116
    %v268 = vunpack.c.l.b16 %v117
    %v269 = vunpack.c.l.b16 %v118
    %v270 = vpack.c.b16 %v207, %v206
    %v271 = vpack.c.b16 %v209, %v208
    %v272 = vpack.c.b16 %v211, %v210
    %v273 = vpack.c.b16 %v213, %v212
    %v274 = vpack.c.b16 %v215, %v214
    %v275 = vpack.c.b16 %v217, %v216
    %v276 = vpack.c.b16 %v219, %v218
    %v277 = vpack.c.b16 %v221, %v220
    %v278 = vpack.c.b16 %v223, %v222
    %v279 = vpack.c.b16 %v225, %v224
    %v280 = vpack.c.b16 %v227, %v226
    %v281 = vpack.c.b16 %v229, %v228
    %v282 = vpack.c.b16 %v231, %v230
    %v283 = vpack.c.b16 %v233, %v232
    %v284 = vpack.c.b16 %v235, %v234
    %v285 = vpack.c.b16 %v237, %v236
    %v286 = vpack.c.b16 %v239, %v238
    %v287 = vpack.c.b16 %v241, %v240
    %v288 = vpack.c.b16 %v243, %v242
    %v289 = vpack.c.b16 %v245, %v244
    %v290 = vpack.c.b16 %v247, %v246
    %v291 = vpack.c.b16 %v249, %v248
    %v292 = vpack.c.b16 %v251, %v250
    %v293 = vpack.c.b16 %v253, %v252
    %v294 = vpack.c.b16 %v255, %v254
    %v295 = vpack.c.b16 %v257, %v256
    %v296 = vpack.c.b16 %v259, %v258
    %v297 = vpack.c.b16 %v261, %v260
    %v298 = vpack.c.b16 %v263, %v262
    %v299 = vpack.c.b16 %v265, %v264
    %v300 = vpack.c.b16 %v267, %v266
    %v301 = vpack.c.b16 %v269, %v268
    %v350 = vunpack.c.l.b16 %v119
    %v351 = vunpack.c.l.b16 %v120
    %v352 = vunpack.c.l.b16 %v121
    %v353 = vunpack.c.l.b16 %v122
    %v354 = vunpack.c.l.b16 %v123
    %v355 = vunpack.c.l.b16 %v124
    %v356 = vunpack.c.l.b16 %v125
    %v357 = vunpack.c.l.b16 %v126
    %v358 = vunpack.c.l.b16 %v127
    %v359 = vunpack.c.l.b16 %v128
    %v360 = vunpack.c.l.b16 %v129
    %v361 = vunpack.c.l.b16 %v130
    %v362 = vunpack.c.l.b16 %v131
    %v363 = vunpack.c.l.b16 %v132
    %v364 = vunpack.c.l.b16 %v133
    %v365 = vunpack.c.l.b16 %v134
    %v366 = vpack.c.b16 %v351, %v350
    %v367 = vpack.c.b16 %v353, %v352
    %v368 = vpack.c.b16 %v355, %v354
    %v369 = vpack.c.b16 %v357, %v356
    %v370 = vpack.c.b16 %v359, %v358
    %v371 = vpack.c.b16 %v361, %v360
    %v372 = vpack.c.b16 %v363, %v362
    %v373 = vpack.c.b16 %v365, %v364
    %382 = vmatprep.subr.bf16.mxu0 0
    %383 = vmatpush1.bf16.msra.mxu0 %v366
    %384 = vmatprep.subr.bf16.mxu0 0
    %385 = vmatpush1.bf16.msra.mxu0 %v367
    %386 = vmatprep.subr.bf16.mxu0 0
    %387 = vmatpush1.bf16.msra.mxu0 %v368
    %388 = vmatprep.subr.bf16.mxu0 0
    %389 = vmatpush1.bf16.msra.mxu0 %v369
    %390 = vmatprep.subr.bf16.mxu0 0
    %391 = vmatpush1.bf16.msra.mxu0 %v370
    %392 = vmatprep.subr.bf16.mxu0 0
    %393 = vmatpush1.bf16.msra.mxu0 %v371
    %394 = vmatprep.subr.bf16.mxu0 0
    %395 = vmatpush1.bf16.msra.mxu0 %v372
    %396 = vmatprep.subr.bf16.mxu0 0
    %397 = vmatpush1.bf16.msra.mxu0 %v373
    %398 = vmatprep.subr.bf16.mxu0 0
    %399 = vmatpush1.bf16.msra.mxu0 0
    %400 = vmatprep.subr.bf16.mxu0 0
    %401 = vmatpush1.bf16.msra.mxu0 0
    %402 = vmatprep.subr.bf16.mxu0 0
    %403 = vmatpush1.bf16.msra.mxu0 0
    %404 = vmatprep.subr.bf16.mxu0 0
    %405 = vmatpush1.bf16.msra.mxu0 0
    %406 = vmatprep.subr.bf16.mxu0 0
    %407 = vmatpush1.bf16.msra.mxu0 0
    %408 = vmatprep.subr.bf16.mxu0 0
    %409 = vmatpush1.bf16.msra.mxu0 0
    %410 = vmatprep.subr.bf16.mxu0 0
    %411 = vmatpush1.bf16.msra.mxu0 0
    %412 = vmatprep.subr.bf16.mxu0 0
    %413 = vmatpush1.bf16.msra.mxu0 0
    %414 = vmatprep.mubr.bf16.mxu0 0
    %415 = vmatmul.mubr.bf16.gmra.mrb[0].mxu0 %v270
    %v416 = vpop.f32.mrb[0].mxu0
    %v417 = vadd.f32 %v140, %v416
    %v418 = vpop.f32.mrb[0].mxu0
    %v419 = vpop.f32.mrb[0].mxu0
    %v420 = vadd.f32 %v140, %v419
    %v421 = vpop.f32.mrb[0].mxu0
    %422 = vmatprep.mubr.bf16.mxu0 0
    %423 = vmatmul.mubr.bf16.gmra.mrb[0].mxu0 %v271
    %v424 = vpop.f32.mrb[0].mxu0
    %v425 = vadd.f32 %v140, %v424
    %v426 = vpop.f32.mrb[0].mxu0
    %v427 = vpop.f32.mrb[0].mxu0
    %v428 = vadd.f32 %v140, %v427
    %v429 = vpop.f32.mrb[0].mxu0
    %430 = vmatprep.mubr.bf16.mxu0 0
    %431 = vmatmul.mubr.bf16.gmra.mrb[0].mxu0 %v272
    %v432 = vpop.f32.mrb[0].mxu0
    %v433 = vadd.f32 %v140, %v432
    %v434 = vpop.f32.mrb[0].mxu0
    %v435 = vpop.f32.mrb[0].mxu0
    %v436 = vadd.f32 %v140, %v435
    %v437 = vpop.f32.mrb[0].mxu0
    %438 = vmatprep.mubr.bf16.mxu0 0
    %439 = vmatmul.mubr.bf16.gmra.mrb[0].mxu0 %v273
    %v440 = vpop.f32.mrb[0].mxu0
    %v441 = vadd.f32 %v140, %v440
    %v442 = vpop.f32.mrb[0].mxu0
    %v443 = vpop.f32.mrb[0].mxu0
    %v444 = vadd.f32 %v140, %v443
    %v445 = vpop.f32.mrb[0].mxu0
    %446 = vmatprep.mubr.bf16.mxu0 0
    %447 = vmatmul.mubr.bf16.gmra.mrb[0].mxu0 %v274
    %v448 = vpop.f32.mrb[0].mxu0
    %v449 = vadd.f32 %v140, %v448
    %v450 = vpop.f32.mrb[0].mxu0
    %v451 = vpop.f32.mrb[0].mxu0
    %v452 = vadd.f32 %v140, %v451
    %v453 = vpop.f32.mrb[0].mxu0
    %454 = vmatprep.mubr.bf16.mxu0 0
    %455 = vmatmul.mubr.bf16.gmra.mrb[0].mxu0 %v275
    %v456 = vpop.f32.mrb[0].mxu0
    %v457 = vadd.f32 %v140, %v456
    %v458 = vpop.f32.mrb[0].mxu0
    %v459 = vpop.f32.mrb[0].mxu0
    %v460 = vadd.f32 %v140, %v459
    %v461 = vpop.f32.mrb[0].mxu0
    %462 = vmatprep.mubr.bf16.mxu0 0
    %463 = vmatmul.mubr.bf16.gmra.mrb[0].mxu0 %v276
    %v464 = vpop.f32.mrb[0].mxu0
    %v465 = vadd.f32 %v140, %v464
    %v466 = vpop.f32.mrb[0].mxu0
    %v467 = vpop.f32.mrb[0].mxu0
    %v468 = vadd.f32 %v140, %v467
    %v469 = vpop.f32.mrb[0].mxu0
    %470 = vmatprep.mubr.bf16.mxu0 0
    %471 = vmatmul.mubr.bf16.gmra.mrb[0].mxu0 %v277
    %v472 = vpop.f32.mrb[0].mxu0
    %v473 = vadd.f32 %v140, %v472
    %v474 = vpop.f32.mrb[0].mxu0
    %v475 = vpop.f32.mrb[0].mxu0
    %v476 = vadd.f32 %v140, %v475
    %v477 = vpop.f32.mrb[0].mxu0
    %478 = vmatprep.mubr.bf16.mxu0 0
    %479 = vmatmul.mubr.bf16.gmra.mrb[0].mxu0 %v278
    %v480 = vpop.f32.mrb[0].mxu0
    %v481 = vadd.f32 %v140, %v480
    %v482 = vpop.f32.mrb[0].mxu0
    %v483 = vpop.f32.mrb[0].mxu0
    %v484 = vadd.f32 %v140, %v483
    %v485 = vpop.f32.mrb[0].mxu0
    %486 = vmatprep.mubr.bf16.mxu0 0
    %487 = vmatmul.mubr.bf16.gmra.mrb[0].mxu0 %v279
    %v488 = vpop.f32.mrb[0].mxu0
    %v489 = vadd.f32 %v140, %v488
    %v490 = vpop.f32.mrb[0].mxu0
    %v491 = vpop.f32.mrb[0].mxu0
    %v492 = vadd.f32 %v140, %v491
    %v493 = vpop.f32.mrb[0].mxu0
    %494 = vmatprep.mubr.bf16.mxu0 0
    %495 = vmatmul.mubr.bf16.gmra.mrb[0].mxu0 %v280
    %v496 = vpop.f32.mrb[0].mxu0
    %v497 = vadd.f32 %v140, %v496
    %v498 = vpop.f32.mrb[0].mxu0
    %v499 = vpop.f32.mrb[0].mxu0
    %v500 = vadd.f32 %v140, %v499
    %v501 = vpop.f32.mrb[0].mxu0
    %502 = vmatprep.mubr.bf16.mxu0 0
    %503 = vmatmul.mubr.bf16.gmra.mrb[0].mxu0 %v281
    %v504 = vpop.f32.mrb[0].mxu0
    %v505 = vadd.f32 %v140, %v504
    %v506 = vpop.f32.mrb[0].mxu0
    %v507 = vpop.f32.mrb[0].mxu0
    %v508 = vadd.f32 %v140, %v507
    %v509 = vpop.f32.mrb[0].mxu0
    %510 = vmatprep.mubr.bf16.mxu0 0
    %511 = vmatmul.mubr.bf16.gmra.mrb[0].mxu0 %v282
    %v512 = vpop.f32.mrb[0].mxu0
    %v513 = vadd.f32 %v140, %v512
    %v514 = vpop.f32.mrb[0].mxu0
    %v515 = vpop.f32.mrb[0].mxu0
    %v516 = vadd.f32 %v140, %v515
    %v517 = vpop.f32.mrb[0].mxu0
    %518 = vmatprep.mubr.bf16.mxu0 0
    %519 = vmatmul.mubr.bf16.gmra.mrb[0].mxu0 %v283
    %v520 = vpop.f32.mrb[0].mxu0
    %v521 = vadd.f32 %v140, %v520
    %v522 = vpop.f32.mrb[0].mxu0
    %v523 = vpop.f32.mrb[0].mxu0
    %v524 = vadd.f32 %v140, %v523
    %v525 = vpop.f32.mrb[0].mxu0
    %526 = vmatprep.mubr.bf16.mxu0 0
    %527 = vmatmul.mubr.bf16.gmra.mrb[0].mxu0 %v284
    %v528 = vpop.f32.mrb[0].mxu0
    %v529 = vadd.f32 %v140, %v528
    %v530 = vpop.f32.mrb[0].mxu0
    %v531 = vpop.f32.mrb[0].mxu0
    %v532 = vadd.f32 %v140, %v531
    %v533 = vpop.f32.mrb[0].mxu0
    %534 = vmatprep.mubr.bf16.mxu0 0
    %535 = vmatmul.mubr.bf16.gmra.mrb[0].mxu0 %v285
    %v536 = vpop.f32.mrb[0].mxu0
    %v537 = vadd.f32 %v140, %v536
    %v538 = vpop.f32.mrb[0].mxu0
    %v539 = vpop.f32.mrb[0].mxu0
    %v540 = vadd.f32 %v140, %v539
    %v541 = vpop.f32.mrb[0].mxu0
    %542 = vmatprep.mubr.bf16.mxu0 0
    %543 = vmatmul.mubr.bf16.gmra.mrb[0].mxu0 %v286
    %v544 = vpop.f32.mrb[0].mxu0
    %v545 = vadd.f32 %v140, %v544
    %v546 = vpop.f32.mrb[0].mxu0
    %v547 = vpop.f32.mrb[0].mxu0
    %v548 = vadd.f32 %v140, %v547
    %v549 = vpop.f32.mrb[0].mxu0
    %550 = vmatprep.mubr.bf16.mxu0 0
    %551 = vmatmul.mubr.bf16.gmra.mrb[0].mxu0 %v287
    %v552 = vpop.f32.mrb[0].mxu0
    %v553 = vadd.f32 %v140, %v552
    %v554 = vpop.f32.mrb[0].mxu0
    %v555 = vpop.f32.mrb[0].mxu0
    %v556 = vadd.f32 %v140, %v555
    %v557 = vpop.f32.mrb[0].mxu0
    %558 = vmatprep.mubr.bf16.mxu0 0
    %559 = vmatmul.mubr.bf16.gmra.mrb[0].mxu0 %v288
    %v560 = vpop.f32.mrb[0].mxu0
    %v561 = vadd.f32 %v140, %v560
    %v562 = vpop.f32.mrb[0].mxu0
    %v563 = vpop.f32.mrb[0].mxu0
    %v564 = vadd.f32 %v140, %v563
    %v565 = vpop.f32.mrb[0].mxu0
    %566 = vmatprep.mubr.bf16.mxu0 0
    %567 = vmatmul.mubr.bf16.gmra.mrb[0].mxu0 %v289
    %v568 = vpop.f32.mrb[0].mxu0
    %v569 = vadd.f32 %v140, %v568
    %v570 = vpop.f32.mrb[0].mxu0
    %v571 = vpop.f32.mrb[0].mxu0
    %v572 = vadd.f32 %v140, %v571
    %v573 = vpop.f32.mrb[0].mxu0
    %574 = vmatprep.mubr.bf16.mxu0 0
    %575 = vmatmul.mubr.bf16.gmra.mrb[0].mxu0 %v290
    %v576 = vpop.f32.mrb[0].mxu0
    %v577 = vadd.f32 %v140, %v576
    %v578 = vpop.f32.mrb[0].mxu0
    %v579 = vpop.f32.mrb[0].mxu0
    %v580 = vadd.f32 %v140, %v579
    %v581 = vpop.f32.mrb[0].mxu0
    %582 = vmatprep.mubr.bf16.mxu0 0
    %583 = vmatmul.mubr.bf16.gmra.mrb[0].mxu0 %v291
    %v584 = vpop.f32.mrb[0].mxu0
    %v585 = vadd.f32 %v140, %v584
    %v586 = vpop.f32.mrb[0].mxu0
    %v587 = vpop.f32.mrb[0].mxu0
    %v588 = vadd.f32 %v140, %v587
    %v589 = vpop.f32.mrb[0].mxu0
    %590 = vmatprep.mubr.bf16.mxu0 0
    %591 = vmatmul.mubr.bf16.gmra.mrb[0].mxu0 %v292
    %v592 = vpop.f32.mrb[0].mxu0
    %v593 = vadd.f32 %v140, %v592
    %v594 = vpop.f32.mrb[0].mxu0
    %v595 = vpop.f32.mrb[0].mxu0
    %v596 = vadd.f32 %v140, %v595
    %v597 = vpop.f32.mrb[0].mxu0
    %598 = vmatprep.mubr.bf16.mxu0 0
    %599 = vmatmul.mubr.bf16.gmra.mrb[0].mxu0 %v293
    %v600 = vpop.f32.mrb[0].mxu0
    %v601 = vadd.f32 %v140, %v600
    %v602 = vpop.f32.mrb[0].mxu0
    %v603 = vpop.f32.mrb[0].mxu0
    %v604 = vadd.f32 %v140, %v603
    %v605 = vpop.f32.mrb[0].mxu0
    %606 = vmatprep.mubr.bf16.mxu0 0
    %607 = vmatmul.mubr.bf16.gmra.mrb[0].mxu0 %v294
    %v608 = vpop.f32.mrb[0].mxu0
    %v609 = vadd.f32 %v140, %v608
    %v610 = vpop.f32.mrb[0].mxu0
    %v611 = vpop.f32.mrb[0].mxu0
    %v612 = vadd.f32 %v140, %v611
    %v613 = vpop.f32.mrb[0].mxu0
    %614 = vmatprep.mubr.bf16.mxu0 0
    %615 = vmatmul.mubr.bf16.gmra.mrb[0].mxu0 %v295
    %v616 = vpop.f32.mrb[0].mxu0
    %v617 = vadd.f32 %v140, %v616
    %v618 = vpop.f32.mrb[0].mxu0
    %v619 = vpop.f32.mrb[0].mxu0
    %v620 = vadd.f32 %v140, %v619
    %v621 = vpop.f32.mrb[0].mxu0
    %622 = vmatprep.mubr.bf16.mxu0 0
    %623 = vmatmul.mubr.bf16.gmra.mrb[0].mxu0 %v296
    %v624 = vpop.f32.mrb[0].mxu0
    %v625 = vadd.f32 %v140, %v624
    %v626 = vpop.f32.mrb[0].mxu0
    %v627 = vpop.f32.mrb[0].mxu0
    %v628 = vadd.f32 %v140, %v627
    %v629 = vpop.f32.mrb[0].mxu0
    %630 = vmatprep.mubr.bf16.mxu0 0
    %631 = vmatmul.mubr.bf16.gmra.mrb[0].mxu0 %v297
    %v632 = vpop.f32.mrb[0].mxu0
    %v633 = vadd.f32 %v140, %v632
    %v634 = vpop.f32.mrb[0].mxu0
    %v635 = vpop.f32.mrb[0].mxu0
    %v636 = vadd.f32 %v140, %v635
    %v637 = vpop.f32.mrb[0].mxu0
    %638 = vmatprep.mubr.bf16.mxu0 0
    %639 = vmatmul.mubr.bf16.gmra.mrb[0].mxu0 %v298
    %v640 = vpop.f32.mrb[0].mxu0
    %v641 = vadd.f32 %v140, %v640
    %v642 = vpop.f32.mrb[0].mxu0
    %v643 = vpop.f32.mrb[0].mxu0
    %v644 = vadd.f32 %v140, %v643
    %v645 = vpop.f32.mrb[0].mxu0
    %646 = vmatprep.mubr.bf16.mxu0 0
    %647 = vmatmul.mubr.bf16.gmra.mrb[0].mxu0 %v299
    %v648 = vpop.f32.mrb[0].mxu0
    %v649 = vadd.f32 %v140, %v648
    %v650 = vpop.f32.mrb[0].mxu0
    %v651 = vpop.f32.mrb[0].mxu0
    %v652 = vadd.f32 %v140, %v651
    %v653 = vpop.f32.mrb[0].mxu0
    %654 = vmatprep.mubr.bf16.mxu0 0
    %655 = vmatmul.mubr.bf16.gmra.mrb[0].mxu0 %v300
    %v656 = vpop.f32.mrb[0].mxu0
    %v657 = vadd.f32 %v140, %v656
    %v658 = vpop.f32.mrb[0].mxu0
    %v659 = vpop.f32.mrb[0].mxu0
    %v660 = vadd.f32 %v140, %v659
    %v661 = vpop.f32.mrb[0].mxu0
    %662 = vmatprep.mubr.bf16.mxu0 0
    %663 = vmatmul.mubr.bf16.gmra.mrb[0].mxu0 %v301
    %v664 = vpop.f32.mrb[0].mxu0
    %v665 = vadd.f32 %v140, %v664
    %v666 = vpop.f32.mrb[0].mxu0
    %v667 = vpop.f32.mrb[0].mxu0
    %v668 = vadd.f32 %v140, %v667
    %v669 = vpop.f32.mrb[0].mxu0
    %670 = vdwg.mxu0
    %v671 = vmax.f32 %v417, 0.0
    %v672 = vmax.f32 %v420, 0.0
    %v673 = vmax.f32 %v425, 0.0
    %v674 = vmax.f32 %v428, 0.0
    %v675 = vmax.f32 %v433, 0.0
    %v676 = vmax.f32 %v436, 0.0
    %v677 = vmax.f32 %v441, 0.0
    %v678 = vmax.f32 %v444, 0.0
    %v679 = vmax.f32 %v449, 0.0
    %v680 = vmax.f32 %v452, 0.0
    %v681 = vmax.f32 %v457, 0.0
    %v682 = vmax.f32 %v460, 0.0
    %v683 = vmax.f32 %v465, 0.0
    %v684 = vmax.f32 %v468, 0.0
    %v685 = vmax.f32 %v473, 0.0
    %v686 = vmax.f32 %v476, 0.0
    %v687 = vmax.f32 %v481, 0.0
    %v688 = vmax.f32 %v484, 0.0
    %v689 = vmax.f32 %v489, 0.0
    %v690 = vmax.f32 %v492, 0.0
    %v691 = vmax.f32 %v497, 0.0
    %v692 = vmax.f32 %v500, 0.0
    %v693 = vmax.f32 %v505, 0.0
    %v694 = vmax.f32 %v508, 0.0
    %v695 = vmax.f32 %v513, 0.0
    %v696 = vmax.f32 %v516, 0.0
    %v697 = vmax.f32 %v521, 0.0
    %v698 = vmax.f32 %v524, 0.0
    %v699 = vmax.f32 %v529, 0.0
    %v700 = vmax.f32 %v532, 0.0
    %v701 = vmax.f32 %v537, 0.0
    %v702 = vmax.f32 %v540, 0.0
    %v703 = vmax.f32 %v545, 0.0
    %v704 = vmax.f32 %v548, 0.0
    %v705 = vmax.f32 %v553, 0.0
    %v706 = vmax.f32 %v556, 0.0
    %v707 = vmax.f32 %v561, 0.0
    %v708 = vmax.f32 %v564, 0.0
    %v709 = vmax.f32 %v569, 0.0
    %v710 = vmax.f32 %v572, 0.0
    %v711 = vmax.f32 %v577, 0.0
    %v712 = vmax.f32 %v580, 0.0
    %v713 = vmax.f32 %v585, 0.0
    %v714 = vmax.f32 %v588, 0.0
    %v715 = vmax.f32 %v593, 0.0
    %v716 = vmax.f32 %v596, 0.0
    %v717 = vmax.f32 %v601, 0.0
    %v718 = vmax.f32 %v604, 0.0
    %v719 = vmax.f32 %v609, 0.0
    %v720 = vmax.f32 %v612, 0.0
    %v721 = vmax.f32 %v617, 0.0
    %v722 = vmax.f32 %v620, 0.0
    %v723 = vmax.f32 %v625, 0.0
    %v724 = vmax.f32 %v628, 0.0
    %v725 = vmax.f32 %v633, 0.0
    %v726 = vmax.f32 %v636, 0.0
    %v727 = vmax.f32 %v641, 0.0
    %v728 = vmax.f32 %v644, 0.0
    %v729 = vmax.f32 %v649, 0.0
    %v730 = vmax.f32 %v652, 0.0
    %v731 = vmax.f32 %v657, 0.0
    %v732 = vmax.f32 %v660, 0.0
    %v733 = vmax.f32 %v665, 0.0
    %v734 = vmax.f32 %v668, 0.0
    %735 = vst [vmem:[#allocation8] sm:$0xff] %v671
    %736 = vst [vmem:[#allocation8 + $0x8] sm:$0xff] %v672
    %737 = vst [vmem:[#allocation8 + $0x10] sm:$0xff] %v673
    %738 = vst [vmem:[#allocation8 + $0x18] sm:$0xff] %v674
    %739 = vst [vmem:[#allocation8 + $0x20] sm:$0xff] %v675
    %740 = vst [vmem:[#allocation8 + $0x28] sm:$0xff] %v676
    %741 = vst [vmem:[#allocation8 + $0x30] sm:$0xff] %v677
    %742 = vst [vmem:[#allocation8 + $0x38] sm:$0xff] %v678
    %743 = vst [vmem:[#allocation8 + $0x40] sm:$0xff] %v679
    %744 = vst [vmem:[#allocation8 + $0x48] sm:$0xff] %v680
    %745 = vst [vmem:[#allocation8 + $0x50] sm:$0xff] %v681
    %746 = vst [vmem:[#allocation8 + $0x58] sm:$0xff] %v682
    %747 = vst [vmem:[#allocation8 + $0x60] sm:$0xff] %v683
    %748 = vst [vmem:[#allocation8 + $0x68] sm:$0xff] %v684
    %749 = vst [vmem:[#allocation8 + $0x70] sm:$0xff] %v685
    %750 = vst [vmem:[#allocation8 + $0x78] sm:$0xff] %v686
    %751 = vst [vmem:[#allocation8 + $0x80] sm:$0xff] %v687
    %752 = vst [vmem:[#allocation8 + $0x88] sm:$0xff] %v688
    %753 = vst [vmem:[#allocation8 + $0x90] sm:$0xff] %v689
    %754 = vst [vmem:[#allocation8 + $0x98] sm:$0xff] %v690
    %755 = vst [vmem:[#allocation8 + $0xa0] sm:$0xff] %v691
    %756 = vst [vmem:[#allocation8 + $0xa8] sm:$0xff] %v692
    %757 = vst [vmem:[#allocation8 + $0xb0] sm:$0xff] %v693
    %758 = vst [vmem:[#allocation8 + $0xb8] sm:$0xff] %v694
    %759 = vst [vmem:[#allocation8 + $0xc0] sm:$0xff] %v695
    %760 = vst [vmem:[#allocation8 + $0xc8] sm:$0xff] %v696
    %761 = vst [vmem:[#allocation8 + $0xd0] sm:$0xff] %v697
    %762 = vst [vmem:[#allocation8 + $0xd8] sm:$0xff] %v698
    %763 = vst [vmem:[#allocation8 + $0xe0] sm:$0xff] %v699
    %764 = vst [vmem:[#allocation8 + $0xe8] sm:$0xff] %v700
    %765 = vst [vmem:[#allocation8 + $0xf0] sm:$0xff] %v701
    %766 = vst [vmem:[#allocation8 + $0xf8] sm:$0xff] %v702
    %767 = vst [vmem:[#allocation8 + $0x100] sm:$0xff] %v703
    %768 = vst [vmem:[#allocation8 + $0x108] sm:$0xff] %v704
    %769 = vst [vmem:[#allocation8 + $0x110] sm:$0xff] %v705
    %770 = vst [vmem:[#allocation8 + $0x118] sm:$0xff] %v706
    %771 = vst [vmem:[#allocation8 + $0x120] sm:$0xff] %v707
    %772 = vst [vmem:[#allocation8 + $0x128] sm:$0xff] %v708
    %773 = vst [vmem:[#allocation8 + $0x130] sm:$0xff] %v709
    %774 = vst [vmem:[#allocation8 + $0x138] sm:$0xff] %v710
    %775 = vst [vmem:[#allocation8 + $0x140] sm:$0xff] %v711
    %776 = vst [vmem:[#allocation8 + $0x148] sm:$0xff] %v712
    %777 = vst [vmem:[#allocation8 + $0x150] sm:$0xff] %v713
    %778 = vst [vmem:[#allocation8 + $0x158] sm:$0xff] %v714
    %779 = vst [vmem:[#allocation8 + $0x160] sm:$0xff] %v715
    %780 = vst [vmem:[#allocation8 + $0x168] sm:$0xff] %v716
    %781 = vst [vmem:[#allocation8 + $0x170] sm:$0xff] %v717
    %782 = vst [vmem:[#allocation8 + $0x178] sm:$0xff] %v718
    %783 = vst [vmem:[#allocation8 + $0x180] sm:$0xff] %v719
    %784 = vst [vmem:[#allocation8 + $0x188] sm:$0xff] %v720
    %785 = vst [vmem:[#allocation8 + $0x190] sm:$0xff] %v721
    %786 = vst [vmem:[#allocation8 + $0x198] sm:$0xff] %v722
    %787 = vst [vmem:[#allocation8 + $0x1a0] sm:$0xff] %v723
    %788 = vst [vmem:[#allocation8 + $0x1a8] sm:$0xff] %v724
    %789 = vst [vmem:[#allocation8 + $0x1b0] sm:$0xff] %v725
    %790 = vst [vmem:[#allocation8 + $0x1b8] sm:$0xff] %v726
    %791 = vst [vmem:[#allocation8 + $0x1c0] sm:$0xff] %v727
    %792 = vst [vmem:[#allocation8 + $0x1c8] sm:$0xff] %v728
    %793 = vst [vmem:[#allocation8 + $0x1d0] sm:$0xff] %v729
    %794 = vst [vmem:[#allocation8 + $0x1d8] sm:$0xff] %v730
    %795 = vst [vmem:[#allocation8 + $0x1e0] sm:$0xff] %v731
    %796 = vst [vmem:[#allocation8 + $0x1e8] sm:$0xff] %v732
    %797 = vst [vmem:[#allocation8 + $0x1f0] sm:$0xff] %v733
    %798 = vst [vmem:[#allocation8 + $0x1f8] sm:$0xff] %v734
    // Predicated region
    $region26: #{basic_conv2d.1} parent=1 // pred_check
      _
    $region27: #{basic_conv2d.1} parent=1 // pred_check_branch
      %800 = sbr.rel (0) target = $region29
    $region28: #{basic_conv2d.1} parent=1 // pred_region
      %s802 = ssub.s32 8192, 8192
      %803 = vsyncadd [#allocation4], %s802
      %s804 = sshll.u32 [#allocation8], 4
      %s805 = int_to_ptr.vmem [resolvable:$true] %s804
      %810 = dma.vmem_to_hbm [thread:$0]  %s805, 8192, %s3, [#allocation4], 128, 128, 8
    $region29: #{basic_conv2d.1} parent=1 // pred_fallthru
      _
    // Predicated region
    $region30: #{basic_conv2d.1} parent=1 // pred_check
      _
    $region31: #{basic_conv2d.1} parent=1 // pred_check_branch
      %812 = sbr.rel (0) target = $region33
    $region32: #{basic_conv2d.1} parent=1 // pred_region
      %813 = dma.done [#allocation4], 8192
    $region33: #{basic_conv2d.1} parent=1 // pred_fallthru
      _
    %814 = vsyncpa [#allocation3], 1
    %815 = vsyncpa [#allocation6], 1
    %816 = vsyncpa [#allocation4], 1

</llo_original>
